<compile_context>
chip_gen: v5e
topology: v5e:2x2
jax: 0.10.0
libtpu: 0.0.40
codegen_flags: <defaults>
</compile_context>

<pallas_src>
import functools

import jax
import jax.numpy as jnp
from jax import lax
from jax.experimental import pallas as pl
from jax.experimental.pallas import tpu as pltpu

BN_EPS = 1e-5


def _round_up(x, m):
    return (x + m - 1) // m * m


# ----------------------------- Pallas kernel ------------------------------- #
def _bn_relu_matmul_kernel(x_ref, scale_ref, shift_ref, w_ref, o_ref):
    # x_ref:     (Cin, TM)        f32   activations, M on the 128-lane axis
    # scale_ref: (Cin, 1)         f32   gamma * rsqrt(var + eps)
    # shift_ref: (Cin, 1)         f32   beta - mean * scale
    # w_ref:     (Ncol_pad, Cin)  bf16  conv-transpose weight columns
    # o_ref:     (Ncol_pad, TM)   f32   per-voxel output column contributions
    x = x_ref[...]
    # BN apply + ReLU in f32 (v5e has no bf16 VPU), broadcast along lanes.
    y = jnp.maximum(x * scale_ref[...] + shift_ref[...], 0.0)
    # bf16 MXU matmul, f32 accumulation.
    o_ref[...] = jnp.dot(
        w_ref[...], y.astype(jnp.bfloat16), preferred_element_type=jnp.float32
    )


def _fused_bn_relu_convT_columns(x_cm, scale, shift, w_t, *, tm):
    """x_cm: (Cin, M_pad) f32, w_t: (Ncol_pad, Cin) bf16 -> (Ncol_pad, M_pad) f32."""
    Cin, M_pad = x_cm.shape
    Ncol_pad = w_t.shape[0]
    grid = (M_pad // tm,)

    flops = 2 * M_pad * Cin * Ncol_pad
    bytes_accessed = 4 * Cin * M_pad + 2 * Ncol_pad * Cin + 4 * Ncol_pad * M_pad

    return pl.pallas_call(
        _bn_relu_matmul_kernel,
        out_shape=jax.ShapeDtypeStruct((Ncol_pad, M_pad), jnp.float32),
        grid=grid,
        in_specs=[
            pl.BlockSpec((Cin, tm), lambda i: (0, i)),       # activation tile
            pl.BlockSpec((Cin, 1), lambda i: (0, 0)),        # scale (resident)
            pl.BlockSpec((Cin, 1), lambda i: (0, 0)),        # shift (resident)
            pl.BlockSpec((Ncol_pad, Cin), lambda i: (0, 0)), # weights (resident)
        ],
        out_specs=pl.BlockSpec((Ncol_pad, tm), lambda i: (0, i)),
        compiler_params=pltpu.CompilerParams(
            dimension_semantics=("parallel",),
            vmem_limit_bytes=32 * 1024 * 1024,
        ),
        cost_estimate=pl.CostEstimate(
            flops=flops, transcendentals=0, bytes_accessed=bytes_accessed
        ),
    )(x_cm, scale, shift, w_t)


# ------------------------ PreConvTranspose3d forward ------------------------ #
def pre_conv_transpose3d(x, gamma, beta, conv_w, conv_b, *, kernel_size, stride,
                         padding, dilation=1):
    """x: (N, Cin, D, H, W) f32 -> (N, Cout, Do, Ho, Wo) f32.

    conv_w follows torch.nn.ConvTranspose3d layout: (Cin, Cout, K, K, K).
    BatchNorm uses batch statistics (training-mode forward of a fresh module).
    """
    N, C, D, H, W = x.shape
    Cin, Cout, KD, KH, KW = conv_w.shape
    assert Cin == C and KD == KH == KW == kernel_size
    K, s, p, dl = kernel_size, stride, padding, dilation

    # --- BN batch stats: global two-pass reduction (XLA glue), folded into
    #     per-channel scale/shift used inside the Pallas kernel.
    mean = jnp.mean(x, axis=(0, 2, 3, 4))
    var = jnp.mean(jnp.square(x - mean.reshape(1, C, 1, 1, 1)), axis=(0, 2, 3, 4))
    scale = (gamma * lax.rsqrt(var + BN_EPS)).reshape(C, 1).astype(jnp.float32)
    shift = (beta - mean * gamma * lax.rsqrt(var + BN_EPS)).reshape(C, 1).astype(jnp.float32)

    # --- Layout: channels on sublanes, M = N*D*H*W on the 128-lane axis.
    M = N * D * H * W
    x_cm = x.reshape(N, C, D * H * W).transpose(1, 0, 2).reshape(C, M)
    TM = 512 if M >= 512 else _round_up(M, 128)
    M_pad = _round_up(M, TM)
    if M_pad != M:
        x_cm = jnp.pad(x_cm, ((0, 0), (0, M_pad - M)))

    # --- Weight columns: rows indexed by (kd, kh, kw, co), padded to x128.
    Ncol = K * K * K * Cout
    Ncol_pad = _round_up(Ncol, 128)
    w_t = jnp.transpose(conv_w, (2, 3, 4, 1, 0)).reshape(Ncol, Cin)
    w_t = jnp.pad(w_t, ((0, Ncol_pad - Ncol), (0, 0))).astype(jnp.bfloat16)

    # --- Fused BN + ReLU + column matmul (Pallas, MXU hot path).
    ycol = _fused_bn_relu_convT_columns(x_cm, scale, shift, w_t, tm=TM)

    # --- col2im overlap-add (XLA glue): interior-dilate each kernel-offset
    #     contribution by the stride and sum.  out[od] gets x[id]*w[kd] where
    #     od + p = id*s + kd*dl  (torch ConvTranspose3d semantics).
    # TODO(synk): this overlap-add could become a Pallas accumulation kernel.
    ycol = ycol[:Ncol, :M].reshape(K, K, K, Cout, N, D, H, W)
    ycol = jnp.transpose(ycol, (0, 1, 2, 4, 3, 5, 6, 7))  # (K,K,K,N,Cout,D,H,W)

    Dd = (D - 1) * s + dl * (K - 1) + 1
    Hd = (H - 1) * s + dl * (K - 1) + 1
    Wd = (W - 1) * s + dl * (K - 1) + 1
    out_buf = jnp.zeros((N, Cout, Dd, Hd, Wd), jnp.float32)
    for kd in range(K):
        for kh in range(K):
            for kw in range(K):
                contrib = lax.pad(
                    ycol[kd, kh, kw], jnp.float32(0.0),
                    [(0, 0, 0), (0, 0, 0),
                     (kd * dl, dl * (K - 1 - kd), s - 1),
                     (kh * dl, dl * (K - 1 - kh), s - 1),
                     (kw * dl, dl * (K - 1 - kw), s - 1)])
                out_buf = out_buf + contrib

    Do = (D - 1) * s - 2 * p + dl * (K - 1) + 1
    Ho = (H - 1) * s - 2 * p + dl * (K - 1) + 1
    Wo = (W - 1) * s - 2 * p + dl * (K - 1) + 1
    out = out_buf[:, :, p:p + Do, p:p + Ho, p:p + Wo]
    return out + conv_b.reshape(1, Cout, 1, 1, 1)


# -------------------------------- reference --------------------------------- #
def pre_conv_transpose3d_ref(x, gamma, beta, conv_w, conv_b, *, kernel_size,
                             stride, padding, dilation=1):
    mean = jnp.mean(x, axis=(0, 2, 3, 4), keepdims=True)
    var = jnp.mean((x - mean) ** 2, axis=(0, 2, 3, 4), keepdims=True)
    y = (x - mean) * lax.rsqrt(var + BN_EPS) * gamma.reshape(1, -1, 1, 1, 1) \
        + beta.reshape(1, -1, 1, 1, 1)
    y = jnp.maximum(y, 0.0)
    K, s, p, dl = kernel_size, stride, padding, dilation
    # torch ConvTranspose3d == conv_general_dilated with lhs_dilation, flipped
    # kernel and swapped in/out channels.
    w_conv = jnp.flip(jnp.transpose(conv_w, (1, 0, 2, 3, 4)), axis=(2, 3, 4))
    pad = dl * (K - 1) - p
    out = lax.conv_general_dilated(
        y, w_conv, window_strides=(1, 1, 1),
        padding=[(pad, pad)] * 3,
        lhs_dilation=(s, s, s), rhs_dilation=(dl, dl, dl),
        dimension_numbers=("NCDHW", "OIDHW", "NCDHW"))
    return out + conv_b.reshape(1, -1, 1, 1, 1)


# ----------------------------------- main ------------------------------------ #
if __name__ == "__main__":
    N, Cin, D, H, W = 2, 4, 8, 8, 8
    Cout, K, stride, padding, dilation = 8, 3, 2, 1, 1

    key = jax.random.PRNGKey(0)
    kx, kg, kb, kw, kcb = jax.random.split(key, 5)

    x = jax.random.normal(kx, (N, Cin, D, H, W), dtype=jnp.float32)
    gamma = 1.0 + 0.1 * jax.random.normal(kg, (Cin,), dtype=jnp.float32)
    beta = 0.1 * jax.random.normal(kb, (Cin,), dtype=jnp.float32)
    # torch.nn.ConvTranspose3d weight layout: (in_planes, out_planes, K, K, K)
    conv_w = 0.1 * jax.random.normal(kw, (Cin, Cout, K, K, K), dtype=jnp.float32)
    conv_b = 0.1 * jax.random.normal(kcb, (Cout,), dtype=jnp.float32)

    fwd = jax.jit(functools.partial(
        pre_conv_transpose3d, kernel_size=K, stride=stride,
        padding=padding, dilation=dilation))
    out = jax.block_until_ready(fwd(x, gamma, beta, conv_w, conv_b))

    ref = pre_conv_transpose3d_ref(x, gamma, beta, conv_w, conv_b,
                                   kernel_size=K, stride=stride,
                                   padding=padding, dilation=dilation)

    Do = (D - 1) * stride - 2 * padding + dilation * (K - 1) + 1
    assert out.shape == (N, Cout, Do, Do, Do), out.shape
    max_err = float(jnp.max(jnp.abs(out - ref)))
    # bf16 MXU operands (f32 accumulation) -> relaxed tolerance vs f32 reference.
    assert jnp.allclose(out, ref, atol=3e-2, rtol=3e-2), max_err

    print("KERNEL_OK")
</pallas_src>

<mosaic_0001>
module attributes {stable_mosaic.version = 11 : i64} {
  func.func @_bn_relu_matmul_kernel(%arg0: i32, %arg1: memref<4x512xf32, #tpu.memory_space<vmem>>, %arg2: memref<4x1xf32, #tpu.memory_space<vmem>>, %arg3: memref<4x1xf32, #tpu.memory_space<vmem>>, %arg4: memref<256x4xbf16, #tpu.memory_space<vmem>>, %arg5: memref<256x512xf32, #tpu.memory_space<vmem>>) attributes {dimension_semantics = [#tpu.dimension_semantics<parallel>], iteration_bounds = array<i64: 2>, scalar_prefetch = 0 : i64, scratch_operands = 0 : i64, tpu.core_type = #tpu.core_type<tc>, window_params = [{transform_indices = @transform_0, window_bounds = array<i64: 4, 512>}, {pipeline_mode = #tpu.pipeline_mode<synchronous>, transform_indices = @transform_1, window_bounds = array<i64: 4, 1>}, {pipeline_mode = #tpu.pipeline_mode<synchronous>, transform_indices = @transform_2, window_bounds = array<i64: 4, 1>}, {pipeline_mode = #tpu.pipeline_mode<synchronous>, transform_indices = @transform_3, window_bounds = array<i64: 256, 4>}, {transform_indices = @transform_4, window_bounds = array<i64: 256, 512>}]} {
    %c0 = arith.constant 0 : index
    %c0_0 = arith.constant 0 : index
    %0 = vector.load %arg1[%c0, %c0_0] : memref<4x512xf32, #tpu.memory_space<vmem>>, vector<4x512xf32>
    %c0_1 = arith.constant 0 : index
    %c0_2 = arith.constant 0 : index
    %1 = vector.load %arg2[%c0_1, %c0_2] : memref<4x1xf32, #tpu.memory_space<vmem>>, vector<4x1xf32>
    %2 = vector.broadcast %1 : vector<4x1xf32> to vector<4x512xf32>
    %3 = arith.mulf %0, %2 : vector<4x512xf32>
    %c0_3 = arith.constant 0 : index
    %c0_4 = arith.constant 0 : index
    %4 = vector.load %arg3[%c0_3, %c0_4] : memref<4x1xf32, #tpu.memory_space<vmem>>, vector<4x1xf32>
    %5 = vector.broadcast %4 : vector<4x1xf32> to vector<4x512xf32>
    %6 = arith.addf %3, %5 : vector<4x512xf32>
    %cst = arith.constant 0.000000e+00 : f32
    %7 = vector.broadcast %cst : f32 to vector<4x512xf32>
    %8 = arith.maximumf %6, %7 : vector<4x512xf32>
    %c0_5 = arith.constant 0 : index
    %c0_6 = arith.constant 0 : index
    %9 = vector.load %arg4[%c0_5, %c0_6] : memref<256x4xbf16, #tpu.memory_space<vmem>>, vector<256x4xbf16>
    %10 = arith.truncf %8 : vector<4x512xf32> to vector<4x512xbf16>
    %cst_7 = arith.constant dense<0.000000e+00> : vector<256x512xf32>
    %11 = tpu.matmul %9, %10, %cst_7 {dimension_numbers = #tpu.dot_dimension_numbers<[1], [0], [0], [1], [0, 0, 1, 1], [], []>} : vector<256x4xbf16>, vector<4x512xbf16>, vector<256x512xf32> -> vector<256x512xf32>
    %c0_8 = arith.constant 0 : index
    %c0_9 = arith.constant 0 : index
    %12 = vector.load %arg5[%c0_8, %c0_9] : memref<256x512xf32, #tpu.memory_space<vmem>>, vector<256x512xf32>
    tpu.vector_store %arg5[%c0_8, %c0_9], %11 {strides = array<i32>} : memref<256x512xf32, #tpu.memory_space<vmem>>, vector<256x512xf32>,
    return
  }
  func.func @transform_0(%arg0: i32) -> (i32, i32) {
    %c0_i32 = arith.constant 0 : i32
    %c0_i32_0 = arith.constant 0 : i32
    return %c0_i32, %arg0 : i32, i32
  }
  func.func @transform_1(%arg0: i32) -> (i32, i32) {
    %c0_i32 = arith.constant 0 : i32
    %c0_i32_0 = arith.constant 0 : i32
    %c0_i32_1 = arith.constant 0 : i32
    return %c0_i32, %c0_i32_0 : i32, i32
  }
  func.func @transform_2(%arg0: i32) -> (i32, i32) {
    %c0_i32 = arith.constant 0 : i32
    %c0_i32_0 = arith.constant 0 : i32
    %c0_i32_1 = arith.constant 0 : i32
    return %c0_i32, %c0_i32_0 : i32, i32
  }
  func.func @transform_3(%arg0: i32) -> (i32, i32) {
    %c0_i32 = arith.constant 0 : i32
    %c0_i32_0 = arith.constant 0 : i32
    %c0_i32_1 = arith.constant 0 : i32
    return %c0_i32, %c0_i32_0 : i32, i32
  }
  func.func @transform_4(%arg0: i32) -> (i32, i32) {
    %c0_i32 = arith.constant 0 : i32
    %c0_i32_0 = arith.constant 0 : i32
    return %c0_i32, %arg0 : i32, i32
  }
}

</mosaic_0001>

<llo_original>
// kernel: pre_conv_transpose3d.1
$region0: #{pre_conv_transpose3d.1}
  #allocation0 [shape = 'u32[]', space=smem, size = 0x4, offset = 0x4, fixed_abs, tag = 'smem constant byte address 0x4 - core index']
  #allocation1 [shape = 'u32[72,128]{1,0:T(1,128)}', space=vmem, size = 0x9000, scoped, tag = 'internal scratch']
  %s0 = inlined_call_operand.vmem [shape: f32[4,1024], index: 0, kind: input, shape index: {}]
  %s1 = inlined_call_operand.vmem [shape: f32[4,1], index: 1, kind: input, shape index: {}]
  %s2 = inlined_call_operand.vmem [shape: f32[4,1], index: 2, kind: input, shape index: {}]
  %s3 = inlined_call_operand.vmem [shape: bf16[256,4], index: 3, kind: input, shape index: {}]
  %s4 = inlined_call_operand.vmem [shape: f32[256,1024], index: 4, kind: output, shape index: {}]
  %s5 = sld [smem:[#allocation0]]
  $region68: #{pre_conv_transpose3d.1} parent=0
    _
  %s7 = ssub.s32 1, %s5
  %s8 = scalar_select 0, %s7, %s5
  $region1: #{pre_conv_transpose3d.1} parent=0
    #allocation2 [shape = 'u8[1048576]{0}', space=vmem, size = 0x100000, scoped, tag = 'output window, operand 0']
    loop: start=0, step=1, limit=4
    $region2: #{pre_conv_transpose3d.1} parent=1 // loop_pre_header
      _
    $region3: #{pre_conv_transpose3d.1} parent=1 // loop_header
      %s10 = sphi 0, %s14
      %p11 = scmp.ge.s32.totalorder %s10, 4
      %s20 = sphi 0, %s22
      %s23 = sphi 0, %s20
      %s24 = sphi 0, %s23
      %s40 = sphi 0, %s24
      %s44 = sphi 0, %s44
      %s46 = sphi 0, %s44
      %s47 = sphi 0, %s46
      %s61 = sphi 0, %s47
      %s65 = sphi 0, %s65
      %s67 = sphi 0, %s65
      %s68 = sphi 0, %s67
      %s82 = sphi 0, %s68
      %s86 = sphi 0, %s86
      %s88 = sphi 0, %s86
      %s89 = sphi 0, %s88
      %s103 = sphi 0, %s89
      %s109 = sphi 0, %s111
      %s112 = sphi 0, %s109
      %s113 = sphi 0, %s112
      %s129 = sphi 0, %s113
    $region4: #{pre_conv_transpose3d.1} parent=1 // loop_header_branch
      %13 = sbr.rel (%p11) target = $region8
    $region5: #{pre_conv_transpose3d.1} parent=1 // loop_body
      %s15 = ssub.s32 %s10, 1
      %s16 = ssub.s32 %s10, 2
      %s17 = sadd.s32 %s10, 1
      %s18 = ssub.s32 %s10, %s17
      %p19 = scmp.eq.s32.totalorder %s18, 0
      %s21 = sadd.s32 %s20, 1
      %s22 = scalar_select %p19, %s20, %s21
      %p25 = pneg %p19
      %p26 = scmp.eq.s32.totalorder %s10, 1
      %p27 = por %p25, %p26
      %p28 = scmp.ne.s32.totalorder %s20, %s23
      %p29 = scmp.eq.s32.totalorder %s10, 0
      %p30 = por %p28, %p29
      %p31 = scmp.ne.s32.totalorder %s20, %s23
      %p32 = scmp.eq.s32.totalorder %s15, 1
      %p33 = por %p31, %p32
      %p34 = scmp.ne.s32.totalorder %s23, %s24
      %p35 = scmp.eq.s32.totalorder %s15, 0
      %p36 = por %p34, %p35
      %p37 = scmp.ne.s32.totalorder %s23, %s24
      %p38 = scmp.eq.s32.totalorder %s16, 1
      %p39 = por %p37, %p38
      %p41 = scmp.ne.s32.totalorder %s24, %s40
      %p42 = scmp.eq.s32.totalorder %s16, 0
      %p43 = por %p41, %p42
      %s45 = sadd.s32 %s44, 1
      %p48 = scmp.eq.s32.totalorder %s10, 1
      %p49 = scmp.ne.s32.totalorder %s44, %s46
      %p50 = scmp.eq.s32.totalorder %s10, 0
      %p51 = por %p49, %p50
      %p52 = scmp.ne.s32.totalorder %s44, %s46
      %p53 = scmp.eq.s32.totalorder %s15, 1
      %p54 = por %p52, %p53
      %p55 = scmp.ne.s32.totalorder %s46, %s47
      %p56 = scmp.eq.s32.totalorder %s15, 0
      %p57 = por %p55, %p56
      %p58 = scmp.ne.s32.totalorder %s46, %s47
      %p59 = scmp.eq.s32.totalorder %s16, 1
      %p60 = por %p58, %p59
      %p62 = scmp.ne.s32.totalorder %s47, %s61
      %p63 = scmp.eq.s32.totalorder %s16, 0
      %p64 = por %p62, %p63
      %s66 = sadd.s32 %s65, 1
      %p69 = scmp.eq.s32.totalorder %s10, 1
      %p70 = scmp.ne.s32.totalorder %s65, %s67
      %p71 = scmp.eq.s32.totalorder %s10, 0
      %p72 = por %p70, %p71
      %p73 = scmp.ne.s32.totalorder %s65, %s67
      %p74 = scmp.eq.s32.totalorder %s15, 1
      %p75 = por %p73, %p74
      %p76 = scmp.ne.s32.totalorder %s67, %s68
      %p77 = scmp.eq.s32.totalorder %s15, 0
      %p78 = por %p76, %p77
      %p79 = scmp.ne.s32.totalorder %s67, %s68
      %p80 = scmp.eq.s32.totalorder %s16, 1
      %p81 = por %p79, %p80
      %p83 = scmp.ne.s32.totalorder %s68, %s82
      %p84 = scmp.eq.s32.totalorder %s16, 0
      %p85 = por %p83, %p84
      %s87 = sadd.s32 %s86, 1
      %p90 = scmp.eq.s32.totalorder %s10, 1
      %p91 = scmp.ne.s32.totalorder %s86, %s88
      %p92 = scmp.eq.s32.totalorder %s10, 0
      %p93 = por %p91, %p92
      %p94 = scmp.ne.s32.totalorder %s86, %s88
      %p95 = scmp.eq.s32.totalorder %s15, 1
      %p96 = por %p94, %p95
      %p97 = scmp.ne.s32.totalorder %s88, %s89
      %p98 = scmp.eq.s32.totalorder %s15, 0
      %p99 = por %p97, %p98
      %p100 = scmp.ne.s32.totalorder %s88, %s89
      %p101 = scmp.eq.s32.totalorder %s16, 1
      %p102 = por %p100, %p101
      %p104 = scmp.ne.s32.totalorder %s89, %s103
      %p105 = scmp.eq.s32.totalorder %s16, 0
      %p106 = por %p104, %p105
      %s107 = ssub.s32 %s10, %s17
      %p108 = scmp.eq.s32.totalorder %s107, 0
      %s110 = sadd.s32 %s109, 1
      %s111 = scalar_select %p108, %s109, %s110
      %p114 = pneg %p108
      %p115 = scmp.eq.s32.totalorder %s10, 1
      %p116 = por %p114, %p115
      %p117 = scmp.ne.s32.totalorder %s109, %s112
      %p118 = scmp.eq.s32.totalorder %s10, 0
      %p119 = por %p117, %p118
      %p120 = scmp.ne.s32.totalorder %s109, %s112
      %p121 = scmp.eq.s32.totalorder %s15, 1
      %p122 = por %p120, %p121
      %p123 = scmp.ne.s32.totalorder %s112, %s113
      %p124 = scmp.eq.s32.totalorder %s15, 0
      %p125 = por %p123, %p124
      %p126 = scmp.ne.s32.totalorder %s112, %s113
      %p127 = scmp.eq.s32.totalorder %s16, 1
      %p128 = por %p126, %p127
      %p130 = scmp.ne.s32.totalorder %s113, %s129
      %p131 = scmp.eq.s32.totalorder %s16, 0
      %p132 = por %p130, %p131
      %p133 = scmp.le.s32.totalorder 1, %s10
      %p134 = scmp.lt.s32.totalorder %s10, 3
      %p135 = pnand %p133, %p134
      %p136 = pneg %p135
      // Predicated region
      $region9: #{pre_conv_transpose3d.1} parent=5 // pred_check
        _
      $region10: #{pre_conv_transpose3d.1} parent=5 // pred_check_branch
        %138 = sbr.rel (%p135) target = $region12
      $region11: #{pre_conv_transpose3d.1} parent=5 // pred_region
        %s139 = ssub.s32 %s10, 1
        // Predicated region
        $region13: #{pre_conv_transpose3d.1} parent=11 // pred_check
          %p140 = pneg %p57
        $region14: #{pre_conv_transpose3d.1} parent=11 // pred_check_branch
          %142 = sbr.rel (%p140) target = $region16
        $region15: #{pre_conv_transpose3d.1} parent=11 // pred_region
          _
        $region16: #{pre_conv_transpose3d.1} parent=11 // pred_fallthru
          _
        // Predicated region
        $region17: #{pre_conv_transpose3d.1} parent=11 // pred_check
          %p143 = pneg %p78
        $region18: #{pre_conv_transpose3d.1} parent=11 // pred_check_branch
          %145 = sbr.rel (%p143) target = $region20
        $region19: #{pre_conv_transpose3d.1} parent=11 // pred_region
          _
        $region20: #{pre_conv_transpose3d.1} parent=11 // pred_fallthru
          _
        // Predicated region
        $region21: #{pre_conv_transpose3d.1} parent=11 // pred_check
          %p146 = pneg %p99
        $region22: #{pre_conv_transpose3d.1} parent=11 // pred_check_branch
          %148 = sbr.rel (%p146) target = $region24
        $region23: #{pre_conv_transpose3d.1} parent=11 // pred_region
          _
        $region24: #{pre_conv_transpose3d.1} parent=11 // pred_fallthru
          _
      $region12: #{pre_conv_transpose3d.1} parent=5 // pred_fallthru
        _
      %p149 = scmp.lt.s32.totalorder %s10, 2
      // Predicated region
      $region25: #{pre_conv_transpose3d.1} parent=5 // pred_check
        %p150 = pneg %p149
      $region26: #{pre_conv_transpose3d.1} parent=5 // pred_check_branch
        %152 = sbr.rel (%p150) target = $region28
      $region27: #{pre_conv_transpose3d.1} parent=5 // pred_region
        // Predicated region
        $region29: #{pre_conv_transpose3d.1} parent=27 // pred_check
          %p153 = pneg %p30
        $region30: #{pre_conv_transpose3d.1} parent=27 // pred_check_branch
          %155 = sbr.rel (%p153) target = $region32
        $region31: #{pre_conv_transpose3d.1} parent=27 // pred_region
          %s156 = smul.u32 4, %s10
          %p157 = scmp.lt.s32.totalorder %s156, 7
          %s158 = scalar_select %p157, %s156, 7
          %s159 = smul.addr %s158, 4
          %s160 = scalar_lea.vmem %s0, %s159
          %s161 = smul.u32 4, %s10
        $region32: #{pre_conv_transpose3d.1} parent=27 // pred_fallthru
          _
      $region28: #{pre_conv_transpose3d.1} parent=5 // pred_fallthru
        _
      %p162 = scmp.le.s32.totalorder 1, %s10
      %p163 = scmp.lt.s32.totalorder %s10, 3
      %p164 = pnand %p162, %p163
      %p165 = pneg %p164
      // Predicated region
      $region33: #{pre_conv_transpose3d.1} parent=5 // pred_check
        _
      $region34: #{pre_conv_transpose3d.1} parent=5 // pred_check_branch
        %167 = sbr.rel (%p164) target = $region36
      $region35: #{pre_conv_transpose3d.1} parent=5 // pred_region
        %s168 = ssub.s32 %s10, 1
        %s169 = smul.u32 4, %s15
        %p170 = scmp.lt.s32.totalorder %s169, 7
        %s171 = scalar_select %p170, %s169, 7
        %s172 = smul.addr %s171, 4
        %s173 = scalar_lea.vmem %s0, %s172
        %p174 = pneg %p36
        %p175 = pneg %p33
        %p176 = pneg %p57
        %p177 = pneg %p54
        %p178 = pneg %p78
        %p179 = pneg %p75
        %p180 = pneg %p99
        %p181 = pneg %p96
        %p182 = pneg %p125
        %p183 = pneg %p122
        %s184 = sand.u32 %s112, 1
        %s185 = sand.u32 %s112, 1
        %s186 = smul.addr %s185, 1024
        %s187 = scalar_lea.vmem [#allocation2], %s186
        %s188 = smul.u32 4, %s15
        %p189 = scmp.lt.s32.totalorder %s188, 7
        %s190 = scalar_select %p189, %s188, 7
        %s191 = smul.addr %s190, 4
        %s192 = scalar_lea.vmem %s0, %s191
        %s193 = smul.u32 4, %s15
        %s194 = smul.u32 4, %s15
        %v196 = vld [vmem:[%s192] sm:$0xff]
        %v197 = vld [vmem:[%s192 + $0x8] sm:$0xff]
        %v198 = vld [vmem:[%s1] sm:$0xf]
        %200 = vset.pattern.permute.xlu0 0
        %201 = vperm.xlu0 %200, %v198
        %v202 = vpop.permute.xlu0 %201
        %v204 = vunpack.c.l.s4 839922192
        %v205 = vunpack.c.0.s8 %v204
        %v206 = vperm.slane %v202, %v205
        %v208 = vmul.f32 %v196, %v206
        %v209 = vmul.f32 %v197, %v206
        %v210 = vld [vmem:[%s2] sm:$0xf]
        %212 = vset.pattern.permute.xlu0 0
        %213 = vperm.xlu0 %212, %v210
        %v214 = vpop.permute.xlu0 %213
        %v216 = vunpack.c.l.s4 839922192
        %v217 = vunpack.c.0.s8 %v216
        %v218 = vperm.slane %v214, %v217
        %v220 = vadd.f32 %v208, %v218
        %v221 = vadd.f32 %v209, %v218
        %v222 = vmax.f32 %v220, 0.0
        %v223 = vmax.f32 %v221, 0.0
        %v224 = vld [vmem:[%s3] sm:$0xf]
        %v225 = vld [vmem:[%s3 + $0x4] sm:$0xf]
        %v226 = vld [vmem:[%s3 + $0x8] sm:$0xf]
        %v227 = vld [vmem:[%s3 + $0xc] sm:$0xf]
        %v228 = vld [vmem:[%s3 + $0x10] sm:$0xf]
        %v229 = vld [vmem:[%s3 + $0x14] sm:$0xf]
        %v230 = vld [vmem:[%s3 + $0x18] sm:$0xf]
        %v231 = vld [vmem:[%s3 + $0x1c] sm:$0xf]
        %v232 = vld [vmem:[%s3 + $0x20] sm:$0xf]
        %v233 = vld [vmem:[%s3 + $0x24] sm:$0xf]
        %v234 = vld [vmem:[%s3 + $0x28] sm:$0xf]
        %v235 = vld [vmem:[%s3 + $0x2c] sm:$0xf]
        %v236 = vld [vmem:[%s3 + $0x30] sm:$0xf]
        %v237 = vld [vmem:[%s3 + $0x34] sm:$0xf]
        %v238 = vld [vmem:[%s3 + $0x38] sm:$0xf]
        %v239 = vld [vmem:[%s3 + $0x3c] sm:$0xf]
        %v240 = vld [vmem:[%s3 + $0x40] sm:$0xf]
        %v241 = vld [vmem:[%s3 + $0x44] sm:$0xf]
        %v242 = vld [vmem:[%s3 + $0x48] sm:$0xf]
        %v243 = vld [vmem:[%s3 + $0x4c] sm:$0xf]
        %v244 = vld [vmem:[%s3 + $0x50] sm:$0xf]
        %v245 = vld [vmem:[%s3 + $0x54] sm:$0xf]
        %v246 = vld [vmem:[%s3 + $0x58] sm:$0xf]
        %v247 = vld [vmem:[%s3 + $0x5c] sm:$0xf]
        %v248 = vld [vmem:[%s3 + $0x60] sm:$0xf]
        %v249 = vld [vmem:[%s3 + $0x64] sm:$0xf]
        %v250 = vld [vmem:[%s3 + $0x68] sm:$0xf]
        %v251 = vld [vmem:[%s3 + $0x6c] sm:$0xf]
        %v252 = vld [vmem:[%s3 + $0x70] sm:$0xf]
        %v253 = vld [vmem:[%s3 + $0x74] sm:$0xf]
        %v254 = vld [vmem:[%s3 + $0x78] sm:$0xf]
        %v255 = vld [vmem:[%s3 + $0x7c] sm:$0xf]
        %258 = vst [vmem:[#allocation1] ss:$2 sm:$0xff] %v222
        %s259 = scalar_lea.vmem [#allocation1], 16
        %260 = vst [vmem:[%s259] ss:$2 sm:$0xff] %v223
        %v261 = vld.sshfl [vmem:[#allocation1] sm:$0xff pattern:$0x75316420]
        %v262 = vld.sshfl [vmem:[#allocation1 + $0x8] sm:$0xff pattern:$0x75316420]
        %v263 = vld.sshfl [vmem:[#allocation1 + $0x10] sm:$0xff pattern:$0x75316420]
        %v264 = vld.sshfl [vmem:[#allocation1 + $0x18] sm:$0xff pattern:$0x75316420]
        %v269 = vpack.c.bf16 %v261, %v261
        %v270 = vpack.c.bf16 %v262, %v262
        %v271 = vpack.c.bf16 %v263, %v263
        %v272 = vpack.c.bf16 %v264, %v264
        %v305 = vunpack.c.l.b16 %v224
        %v306 = vunpack.c.l.b16 %v225
        %v307 = vunpack.c.l.b16 %v226
        %v308 = vunpack.c.l.b16 %v227
        %v309 = vunpack.c.l.b16 %v228
        %v310 = vunpack.c.l.b16 %v229
        %v311 = vunpack.c.l.b16 %v230
        %v312 = vunpack.c.l.b16 %v231
        %v313 = vunpack.c.l.b16 %v232
        %v314 = vunpack.c.l.b16 %v233
        %v315 = vunpack.c.l.b16 %v234
        %v316 = vunpack.c.l.b16 %v235
        %v317 = vunpack.c.l.b16 %v236
        %v318 = vunpack.c.l.b16 %v237
        %v319 = vunpack.c.l.b16 %v238
        %v320 = vunpack.c.l.b16 %v239
        %v321 = vunpack.c.l.b16 %v240
        %v322 = vunpack.c.l.b16 %v241
        %v323 = vunpack.c.l.b16 %v242
        %v324 = vunpack.c.l.b16 %v243
        %v325 = vunpack.c.l.b16 %v244
        %v326 = vunpack.c.l.b16 %v245
        %v327 = vunpack.c.l.b16 %v246
        %v328 = vunpack.c.l.b16 %v247
        %v329 = vunpack.c.l.b16 %v248
        %v330 = vunpack.c.l.b16 %v249
        %v331 = vunpack.c.l.b16 %v250
        %v332 = vunpack.c.l.b16 %v251
        %v333 = vunpack.c.l.b16 %v252
        %v334 = vunpack.c.l.b16 %v253
        %v335 = vunpack.c.l.b16 %v254
        %v336 = vunpack.c.l.b16 %v255
        %v337 = vpack.c.b16 %v306, %v305
        %v338 = vpack.c.b16 %v308, %v307
        %v339 = vpack.c.b16 %v310, %v309
        %v340 = vpack.c.b16 %v312, %v311
        %v341 = vpack.c.b16 %v314, %v313
        %v342 = vpack.c.b16 %v316, %v315
        %v343 = vpack.c.b16 %v318, %v317
        %v344 = vpack.c.b16 %v320, %v319
        %v345 = vpack.c.b16 %v322, %v321
        %v346 = vpack.c.b16 %v324, %v323
        %v347 = vpack.c.b16 %v326, %v325
        %v348 = vpack.c.b16 %v328, %v327
        %v349 = vpack.c.b16 %v330, %v329
        %v350 = vpack.c.b16 %v332, %v331
        %v351 = vpack.c.b16 %v334, %v333
        %v352 = vpack.c.b16 %v336, %v335
        %vm353 = vcmask 31744
        %v355 = vsel %vm353, %v337, 0
        %v358 = vsel %vm353, %v338, 0
        %v361 = vsel %vm353, %v339, 0
        %v364 = vsel %vm353, %v340, 0
        %v367 = vsel %vm353, %v341, 0
        %v370 = vsel %vm353, %v342, 0
        %v373 = vsel %vm353, %v343, 0
        %v376 = vsel %vm353, %v344, 0
        %v379 = vsel %vm353, %v345, 0
        %v382 = vsel %vm353, %v346, 0
        %v385 = vsel %vm353, %v347, 0
        %v388 = vsel %vm353, %v348, 0
        %v391 = vsel %vm353, %v349, 0
        %v394 = vsel %vm353, %v350, 0
        %v397 = vsel %vm353, %v351, 0
        %v400 = vsel %vm353, %v352, 0
        %vm402 = vcmask 1041408
        %v404 = vsel %vm402, %v269, 0
        %v407 = vsel %vm402, %v270, 0
        %v410 = vsel %vm402, %v271, 0
        %v413 = vsel %vm402, %v272, 0
        %415 = vmatpush.bf16.msra.mxu0 0
        %416 = vmatpush.bf16.msra.mxu0 0
        %417 = vmatpush.bf16.msra.mxu0 0
        %418 = vmatpush.bf16.msra.mxu0 0
        %419 = vmatpush.bf16.msra.mxu0 0
        %420 = vmatpush.bf16.msra.mxu0 0
        %421 = vmatpush.bf16.msra.mxu0 0
        %422 = vmatpush.bf16.msra.mxu0 %v404
        %423 = vmatmul.bf16.gmra.mxu0 %v355
        %v424 = vpop.f32.mrf.mxu0
        %v425 = vadd.f32 0.0, %v424
        %v426 = vpop.f32.mrf.mxu0
        %v427 = vadd.f32 0.0, %v426
        %428 = vmatmul.bf16.gmra.mxu0 %v358
        %v429 = vpop.f32.mrf.mxu0
        %v430 = vadd.f32 0.0, %v429
        %v431 = vpop.f32.mrf.mxu0
        %v432 = vadd.f32 0.0, %v431
        %433 = vmatmul.bf16.gmra.mxu0 %v361
        %v434 = vpop.f32.mrf.mxu0
        %v435 = vadd.f32 0.0, %v434
        %v436 = vpop.f32.mrf.mxu0
        %v437 = vadd.f32 0.0, %v436
        %438 = vmatmul.bf16.gmra.mxu0 %v364
        %v439 = vpop.f32.mrf.mxu0
        %v440 = vadd.f32 0.0, %v439
        %v441 = vpop.f32.mrf.mxu0
        %v442 = vadd.f32 0.0, %v441
        %443 = vmatmul.bf16.gmra.mxu0 %v367
        %v444 = vpop.f32.mrf.mxu0
        %v445 = vadd.f32 0.0, %v444
        %v446 = vpop.f32.mrf.mxu0
        %v447 = vadd.f32 0.0, %v446
        %448 = vmatmul.bf16.gmra.mxu0 %v370
        %v449 = vpop.f32.mrf.mxu0
        %v450 = vadd.f32 0.0, %v449
        %v451 = vpop.f32.mrf.mxu0
        %v452 = vadd.f32 0.0, %v451
        %453 = vmatmul.bf16.gmra.mxu0 %v373
        %v454 = vpop.f32.mrf.mxu0
        %v455 = vadd.f32 0.0, %v454
        %v456 = vpop.f32.mrf.mxu0
        %v457 = vadd.f32 0.0, %v456
        %458 = vmatmul.bf16.gmra.mxu0 %v376
        %v459 = vpop.f32.mrf.mxu0
        %v460 = vadd.f32 0.0, %v459
        %v461 = vpop.f32.mrf.mxu0
        %v462 = vadd.f32 0.0, %v461
        %463 = vmatmul.bf16.gmra.mxu0 %v379
        %v464 = vpop.f32.mrf.mxu0
        %v465 = vadd.f32 0.0, %v464
        %v466 = vpop.f32.mrf.mxu0
        %v467 = vadd.f32 0.0, %v466
        %468 = vmatmul.bf16.gmra.mxu0 %v382
        %v469 = vpop.f32.mrf.mxu0
        %v470 = vadd.f32 0.0, %v469
        %v471 = vpop.f32.mrf.mxu0
        %v472 = vadd.f32 0.0, %v471
        %473 = vmatmul.bf16.gmra.mxu0 %v385
        %v474 = vpop.f32.mrf.mxu0
        %v475 = vadd.f32 0.0, %v474
        %v476 = vpop.f32.mrf.mxu0
        %v477 = vadd.f32 0.0, %v476
        %478 = vmatmul.bf16.gmra.mxu0 %v388
        %v479 = vpop.f32.mrf.mxu0
        %v480 = vadd.f32 0.0, %v479
        %v481 = vpop.f32.mrf.mxu0
        %v482 = vadd.f32 0.0, %v481
        %483 = vmatmul.bf16.gmra.mxu0 %v391
        %v484 = vpop.f32.mrf.mxu0
        %v485 = vadd.f32 0.0, %v484
        %v486 = vpop.f32.mrf.mxu0
        %v487 = vadd.f32 0.0, %v486
        %488 = vmatmul.bf16.gmra.mxu0 %v394
        %v489 = vpop.f32.mrf.mxu0
        %v490 = vadd.f32 0.0, %v489
        %v491 = vpop.f32.mrf.mxu0
        %v492 = vadd.f32 0.0, %v491
        %493 = vmatmul.bf16.gmra.mxu0 %v397
        %v494 = vpop.f32.mrf.mxu0
        %v495 = vadd.f32 0.0, %v494
        %v496 = vpop.f32.mrf.mxu0
        %v497 = vadd.f32 0.0, %v496
        %498 = vmatmul.bf16.gmra.mxu0 %v400
        %v499 = vpop.f32.mrf.mxu0
        %v500 = vadd.f32 0.0, %v499
        %v501 = vpop.f32.mrf.mxu0
        %v502 = vadd.f32 0.0, %v501
        %503 = vdwg.mxu0
        %504 = vmatpush.bf16.msra.mxu0 0
        %505 = vmatpush.bf16.msra.mxu0 0
        %506 = vmatpush.bf16.msra.mxu0 0
        %507 = vmatpush.bf16.msra.mxu0 0
        %508 = vmatpush.bf16.msra.mxu0 0
        %509 = vmatpush.bf16.msra.mxu0 0
        %510 = vmatpush.bf16.msra.mxu0 0
        %511 = vmatpush.bf16.msra.mxu0 %v407
        %512 = vmatmul.bf16.gmra.mxu0 %v355
        %v513 = vpop.f32.mrf.mxu0
        %v514 = vadd.f32 0.0, %v513
        %v515 = vpop.f32.mrf.mxu0
        %v516 = vadd.f32 0.0, %v515
        %517 = vmatmul.bf16.gmra.mxu0 %v358
        %v518 = vpop.f32.mrf.mxu0
        %v519 = vadd.f32 0.0, %v518
        %v520 = vpop.f32.mrf.mxu0
        %v521 = vadd.f32 0.0, %v520
        %522 = vmatmul.bf16.gmra.mxu0 %v361
        %v523 = vpop.f32.mrf.mxu0
        %v524 = vadd.f32 0.0, %v523
        %v525 = vpop.f32.mrf.mxu0
        %v526 = vadd.f32 0.0, %v525
        %527 = vmatmul.bf16.gmra.mxu0 %v364
        %v528 = vpop.f32.mrf.mxu0
        %v529 = vadd.f32 0.0, %v528
        %v530 = vpop.f32.mrf.mxu0
        %v531 = vadd.f32 0.0, %v530
        %532 = vmatmul.bf16.gmra.mxu0 %v367
        %v533 = vpop.f32.mrf.mxu0
        %v534 = vadd.f32 0.0, %v533
        %v535 = vpop.f32.mrf.mxu0
        %v536 = vadd.f32 0.0, %v535
        %537 = vmatmul.bf16.gmra.mxu0 %v370
        %v538 = vpop.f32.mrf.mxu0
        %v539 = vadd.f32 0.0, %v538
        %v540 = vpop.f32.mrf.mxu0
        %v541 = vadd.f32 0.0, %v540
        %542 = vmatmul.bf16.gmra.mxu0 %v373
        %v543 = vpop.f32.mrf.mxu0
        %v544 = vadd.f32 0.0, %v543
        %v545 = vpop.f32.mrf.mxu0
        %v546 = vadd.f32 0.0, %v545
        %547 = vmatmul.bf16.gmra.mxu0 %v376
        %v548 = vpop.f32.mrf.mxu0
        %v549 = vadd.f32 0.0, %v548
        %v550 = vpop.f32.mrf.mxu0
        %v551 = vadd.f32 0.0, %v550
        %552 = vmatmul.bf16.gmra.mxu0 %v379
        %v553 = vpop.f32.mrf.mxu0
        %v554 = vadd.f32 0.0, %v553
        %v555 = vpop.f32.mrf.mxu0
        %v556 = vadd.f32 0.0, %v555
        %557 = vmatmul.bf16.gmra.mxu0 %v382
        %v558 = vpop.f32.mrf.mxu0
        %v559 = vadd.f32 0.0, %v558
        %v560 = vpop.f32.mrf.mxu0
        %v561 = vadd.f32 0.0, %v560
        %562 = vmatmul.bf16.gmra.mxu0 %v385
        %v563 = vpop.f32.mrf.mxu0
        %v564 = vadd.f32 0.0, %v563
        %v565 = vpop.f32.mrf.mxu0
        %v566 = vadd.f32 0.0, %v565
        %567 = vmatmul.bf16.gmra.mxu0 %v388
        %v568 = vpop.f32.mrf.mxu0
        %v569 = vadd.f32 0.0, %v568
        %v570 = vpop.f32.mrf.mxu0
        %v571 = vadd.f32 0.0, %v570
        %572 = vmatmul.bf16.gmra.mxu0 %v391
        %v573 = vpop.f32.mrf.mxu0
        %v574 = vadd.f32 0.0, %v573
        %v575 = vpop.f32.mrf.mxu0
        %v576 = vadd.f32 0.0, %v575
        %577 = vmatmul.bf16.gmra.mxu0 %v394
        %v578 = vpop.f32.mrf.mxu0
        %v579 = vadd.f32 0.0, %v578
        %v580 = vpop.f32.mrf.mxu0
        %v581 = vadd.f32 0.0, %v580
        %582 = vmatmul.bf16.gmra.mxu0 %v397
        %v583 = vpop.f32.mrf.mxu0
        %v584 = vadd.f32 0.0, %v583
        %v585 = vpop.f32.mrf.mxu0
        %v586 = vadd.f32 0.0, %v585
        %587 = vmatmul.bf16.gmra.mxu0 %v400
        %v588 = vpop.f32.mrf.mxu0
        %v589 = vadd.f32 0.0, %v588
        %v590 = vpop.f32.mrf.mxu0
        %v591 = vadd.f32 0.0, %v590
        %592 = vdwg.mxu0
        %593 = vmatpush.bf16.msra.mxu0 0
        %594 = vmatpush.bf16.msra.mxu0 0
        %595 = vmatpush.bf16.msra.mxu0 0
        %596 = vmatpush.bf16.msra.mxu0 0
        %597 = vmatpush.bf16.msra.mxu0 0
        %598 = vmatpush.bf16.msra.mxu0 0
        %599 = vmatpush.bf16.msra.mxu0 0
        %600 = vmatpush.bf16.msra.mxu0 %v410
        %601 = vmatmul.bf16.gmra.mxu0 %v355
        %v602 = vpop.f32.mrf.mxu0
        %v603 = vadd.f32 0.0, %v602
        %v604 = vpop.f32.mrf.mxu0
        %v605 = vadd.f32 0.0, %v604
        %606 = vmatmul.bf16.gmra.mxu0 %v358
        %v607 = vpop.f32.mrf.mxu0
        %v608 = vadd.f32 0.0, %v607
        %v609 = vpop.f32.mrf.mxu0
        %v610 = vadd.f32 0.0, %v609
        %611 = vmatmul.bf16.gmra.mxu0 %v361
        %v612 = vpop.f32.mrf.mxu0
        %v613 = vadd.f32 0.0, %v612
        %v614 = vpop.f32.mrf.mxu0
        %v615 = vadd.f32 0.0, %v614
        %616 = vmatmul.bf16.gmra.mxu0 %v364
        %v617 = vpop.f32.mrf.mxu0
        %v618 = vadd.f32 0.0, %v617
        %v619 = vpop.f32.mrf.mxu0
        %v620 = vadd.f32 0.0, %v619
        %621 = vmatmul.bf16.gmra.mxu0 %v367
        %v622 = vpop.f32.mrf.mxu0
        %v623 = vadd.f32 0.0, %v622
        %v624 = vpop.f32.mrf.mxu0
        %v625 = vadd.f32 0.0, %v624
        %626 = vmatmul.bf16.gmra.mxu0 %v370
        %v627 = vpop.f32.mrf.mxu0
        %v628 = vadd.f32 0.0, %v627
        %v629 = vpop.f32.mrf.mxu0
        %v630 = vadd.f32 0.0, %v629
        %631 = vmatmul.bf16.gmra.mxu0 %v373
        %v632 = vpop.f32.mrf.mxu0
        %v633 = vadd.f32 0.0, %v632
        %v634 = vpop.f32.mrf.mxu0
        %v635 = vadd.f32 0.0, %v634
        %636 = vmatmul.bf16.gmra.mxu0 %v376
        %v637 = vpop.f32.mrf.mxu0
        %v638 = vadd.f32 0.0, %v637
        %v639 = vpop.f32.mrf.mxu0
        %v640 = vadd.f32 0.0, %v639
        %641 = vmatmul.bf16.gmra.mxu0 %v379
        %v642 = vpop.f32.mrf.mxu0
        %v643 = vadd.f32 0.0, %v642
        %v644 = vpop.f32.mrf.mxu0
        %v645 = vadd.f32 0.0, %v644
        %646 = vmatmul.bf16.gmra.mxu0 %v382
        %v647 = vpop.f32.mrf.mxu0
        %v648 = vadd.f32 0.0, %v647
        %v649 = vpop.f32.mrf.mxu0
        %v650 = vadd.f32 0.0, %v649
        %651 = vmatmul.bf16.gmra.mxu0 %v385
        %v652 = vpop.f32.mrf.mxu0
        %v653 = vadd.f32 0.0, %v652
        %v654 = vpop.f32.mrf.mxu0
        %v655 = vadd.f32 0.0, %v654
        %656 = vmatmul.bf16.gmra.mxu0 %v388
        %v657 = vpop.f32.mrf.mxu0
        %v658 = vadd.f32 0.0, %v657
        %v659 = vpop.f32.mrf.mxu0
        %v660 = vadd.f32 0.0, %v659
        %661 = vmatmul.bf16.gmra.mxu0 %v391
        %v662 = vpop.f32.mrf.mxu0
        %v663 = vadd.f32 0.0, %v662
        %v664 = vpop.f32.mrf.mxu0
        %v665 = vadd.f32 0.0, %v664
        %666 = vmatmul.bf16.gmra.mxu0 %v394
        %v667 = vpop.f32.mrf.mxu0
        %v668 = vadd.f32 0.0, %v667
        %v669 = vpop.f32.mrf.mxu0
        %v670 = vadd.f32 0.0, %v669
        %671 = vmatmul.bf16.gmra.mxu0 %v397
        %v672 = vpop.f32.mrf.mxu0
        %v673 = vadd.f32 0.0, %v672
        %v674 = vpop.f32.mrf.mxu0
        %v675 = vadd.f32 0.0, %v674
        %676 = vmatmul.bf16.gmra.mxu0 %v400
        %v677 = vpop.f32.mrf.mxu0
        %v678 = vadd.f32 0.0, %v677
        %v679 = vpop.f32.mrf.mxu0
        %v680 = vadd.f32 0.0, %v679
        %681 = vdwg.mxu0
        %682 = vmatpush.bf16.msra.mxu0 0
        %683 = vmatpush.bf16.msra.mxu0 0
        %684 = vmatpush.bf16.msra.mxu0 0
        %685 = vmatpush.bf16.msra.mxu0 0
        %686 = vmatpush.bf16.msra.mxu0 0
        %687 = vmatpush.bf16.msra.mxu0 0
        %688 = vmatpush.bf16.msra.mxu0 0
        %689 = vmatpush.bf16.msra.mxu0 %v413
        %690 = vmatmul.bf16.gmra.mxu0 %v355
        %v691 = vpop.f32.mrf.mxu0
        %v692 = vadd.f32 0.0, %v691
        %v693 = vpop.f32.mrf.mxu0
        %v694 = vadd.f32 0.0, %v693
        %695 = vmatmul.bf16.gmra.mxu0 %v358
        %v696 = vpop.f32.mrf.mxu0
        %v697 = vadd.f32 0.0, %v696
        %v698 = vpop.f32.mrf.mxu0
        %v699 = vadd.f32 0.0, %v698
        %700 = vmatmul.bf16.gmra.mxu0 %v361
        %v701 = vpop.f32.mrf.mxu0
        %v702 = vadd.f32 0.0, %v701
        %v703 = vpop.f32.mrf.mxu0
        %v704 = vadd.f32 0.0, %v703
        %705 = vmatmul.bf16.gmra.mxu0 %v364
        %v706 = vpop.f32.mrf.mxu0
        %v707 = vadd.f32 0.0, %v706
        %v708 = vpop.f32.mrf.mxu0
        %v709 = vadd.f32 0.0, %v708
        %710 = vmatmul.bf16.gmra.mxu0 %v367
        %v711 = vpop.f32.mrf.mxu0
        %v712 = vadd.f32 0.0, %v711
        %v713 = vpop.f32.mrf.mxu0
        %v714 = vadd.f32 0.0, %v713
        %715 = vmatmul.bf16.gmra.mxu0 %v370
        %v716 = vpop.f32.mrf.mxu0
        %v717 = vadd.f32 0.0, %v716
        %v718 = vpop.f32.mrf.mxu0
        %v719 = vadd.f32 0.0, %v718
        %720 = vmatmul.bf16.gmra.mxu0 %v373
        %v721 = vpop.f32.mrf.mxu0
        %v722 = vadd.f32 0.0, %v721
        %v723 = vpop.f32.mrf.mxu0
        %v724 = vadd.f32 0.0, %v723
        %725 = vmatmul.bf16.gmra.mxu0 %v376
        %v726 = vpop.f32.mrf.mxu0
        %v727 = vadd.f32 0.0, %v726
        %v728 = vpop.f32.mrf.mxu0
        %v729 = vadd.f32 0.0, %v728
        %730 = vmatmul.bf16.gmra.mxu0 %v379
        %v731 = vpop.f32.mrf.mxu0
        %v732 = vadd.f32 0.0, %v731
        %v733 = vpop.f32.mrf.mxu0
        %v734 = vadd.f32 0.0, %v733
        %735 = vmatmul.bf16.gmra.mxu0 %v382
        %v736 = vpop.f32.mrf.mxu0
        %v737 = vadd.f32 0.0, %v736
        %v738 = vpop.f32.mrf.mxu0
        %v739 = vadd.f32 0.0, %v738
        %740 = vmatmul.bf16.gmra.mxu0 %v385
        %v741 = vpop.f32.mrf.mxu0
        %v742 = vadd.f32 0.0, %v741
        %v743 = vpop.f32.mrf.mxu0
        %v744 = vadd.f32 0.0, %v743
        %745 = vmatmul.bf16.gmra.mxu0 %v388
        %v746 = vpop.f32.mrf.mxu0
        %v747 = vadd.f32 0.0, %v746
        %v748 = vpop.f32.mrf.mxu0
        %v749 = vadd.f32 0.0, %v748
        %750 = vmatmul.bf16.gmra.mxu0 %v391
        %v751 = vpop.f32.mrf.mxu0
        %v752 = vadd.f32 0.0, %v751
        %v753 = vpop.f32.mrf.mxu0
        %v754 = vadd.f32 0.0, %v753
        %755 = vmatmul.bf16.gmra.mxu0 %v394
        %v756 = vpop.f32.mrf.mxu0
        %v757 = vadd.f32 0.0, %v756
        %v758 = vpop.f32.mrf.mxu0
        %v759 = vadd.f32 0.0, %v758
        %760 = vmatmul.bf16.gmra.mxu0 %v397
        %v761 = vpop.f32.mrf.mxu0
        %v762 = vadd.f32 0.0, %v761
        %v763 = vpop.f32.mrf.mxu0
        %v764 = vadd.f32 0.0, %v763
        %765 = vmatmul.bf16.gmra.mxu0 %v400
        %v766 = vpop.f32.mrf.mxu0
        %v767 = vadd.f32 0.0, %v766
        %v768 = vpop.f32.mrf.mxu0
        %v769 = vadd.f32 0.0, %v768
        %770 = vdwg.mxu0
        %771 = vst [vmem:[%s187] sm:$0xff] %v425
        %772 = vst [vmem:[%s187 + $0x8] sm:$0xff] %v514
        %773 = vst [vmem:[%s187 + $0x10] sm:$0xff] %v603
        %774 = vst [vmem:[%s187 + $0x18] sm:$0xff] %v692
        %775 = vst [vmem:[%s187 + $0x20] sm:$0xff] %v427
        %776 = vst [vmem:[%s187 + $0x28] sm:$0xff] %v516
        %777 = vst [vmem:[%s187 + $0x30] sm:$0xff] %v605
        %778 = vst [vmem:[%s187 + $0x38] sm:$0xff] %v694
        %779 = vst [vmem:[%s187 + $0x40] sm:$0xff] %v430
        %780 = vst [vmem:[%s187 + $0x48] sm:$0xff] %v519
        %781 = vst [vmem:[%s187 + $0x50] sm:$0xff] %v608
        %782 = vst [vmem:[%s187 + $0x58] sm:$0xff] %v697
        %783 = vst [vmem:[%s187 + $0x60] sm:$0xff] %v432
        %784 = vst [vmem:[%s187 + $0x68] sm:$0xff] %v521
        %785 = vst [vmem:[%s187 + $0x70] sm:$0xff] %v610
        %786 = vst [vmem:[%s187 + $0x78] sm:$0xff] %v699
        %787 = vst [vmem:[%s187 + $0x80] sm:$0xff] %v435
        %788 = vst [vmem:[%s187 + $0x88] sm:$0xff] %v524
        %789 = vst [vmem:[%s187 + $0x90] sm:$0xff] %v613
        %790 = vst [vmem:[%s187 + $0x98] sm:$0xff] %v702
        %791 = vst [vmem:[%s187 + $0xa0] sm:$0xff] %v437
        %792 = vst [vmem:[%s187 + $0xa8] sm:$0xff] %v526
        %793 = vst [vmem:[%s187 + $0xb0] sm:$0xff] %v615
        %794 = vst [vmem:[%s187 + $0xb8] sm:$0xff] %v704
        %795 = vst [vmem:[%s187 + $0xc0] sm:$0xff] %v440
        %796 = vst [vmem:[%s187 + $0xc8] sm:$0xff] %v529
        %797 = vst [vmem:[%s187 + $0xd0] sm:$0xff] %v618
        %798 = vst [vmem:[%s187 + $0xd8] sm:$0xff] %v707
        %799 = vst [vmem:[%s187 + $0xe0] sm:$0xff] %v442
        %800 = vst [vmem:[%s187 + $0xe8] sm:$0xff] %v531
        %801 = vst [vmem:[%s187 + $0xf0] sm:$0xff] %v620
        %802 = vst [vmem:[%s187 + $0xf8] sm:$0xff] %v709
        %803 = vst [vmem:[%s187 + $0x100] sm:$0xff] %v445
        %804 = vst [vmem:[%s187 + $0x108] sm:$0xff] %v534
        %805 = vst [vmem:[%s187 + $0x110] sm:$0xff] %v623
        %806 = vst [vmem:[%s187 + $0x118] sm:$0xff] %v712
        %807 = vst [vmem:[%s187 + $0x120] sm:$0xff] %v447
        %808 = vst [vmem:[%s187 + $0x128] sm:$0xff] %v536
        %809 = vst [vmem:[%s187 + $0x130] sm:$0xff] %v625
        %810 = vst [vmem:[%s187 + $0x138] sm:$0xff] %v714
        %811 = vst [vmem:[%s187 + $0x140] sm:$0xff] %v450
        %812 = vst [vmem:[%s187 + $0x148] sm:$0xff] %v539
        %813 = vst [vmem:[%s187 + $0x150] sm:$0xff] %v628
        %814 = vst [vmem:[%s187 + $0x158] sm:$0xff] %v717
        %815 = vst [vmem:[%s187 + $0x160] sm:$0xff] %v452
        %816 = vst [vmem:[%s187 + $0x168] sm:$0xff] %v541
        %817 = vst [vmem:[%s187 + $0x170] sm:$0xff] %v630
        %818 = vst [vmem:[%s187 + $0x178] sm:$0xff] %v719
        %819 = vst [vmem:[%s187 + $0x180] sm:$0xff] %v455
        %820 = vst [vmem:[%s187 + $0x188] sm:$0xff] %v544
        %821 = vst [vmem:[%s187 + $0x190] sm:$0xff] %v633
        %822 = vst [vmem:[%s187 + $0x198] sm:$0xff] %v722
        %823 = vst [vmem:[%s187 + $0x1a0] sm:$0xff] %v457
        %824 = vst [vmem:[%s187 + $0x1a8] sm:$0xff] %v546
        %825 = vst [vmem:[%s187 + $0x1b0] sm:$0xff] %v635
        %826 = vst [vmem:[%s187 + $0x1b8] sm:$0xff] %v724
        %827 = vst [vmem:[%s187 + $0x1c0] sm:$0xff] %v460
        %828 = vst [vmem:[%s187 + $0x1c8] sm:$0xff] %v549
        %829 = vst [vmem:[%s187 + $0x1d0] sm:$0xff] %v638
        %830 = vst [vmem:[%s187 + $0x1d8] sm:$0xff] %v727
        %831 = vst [vmem:[%s187 + $0x1e0] sm:$0xff] %v462
        %832 = vst [vmem:[%s187 + $0x1e8] sm:$0xff] %v551
        %833 = vst [vmem:[%s187 + $0x1f0] sm:$0xff] %v640
        %834 = vst [vmem:[%s187 + $0x1f8] sm:$0xff] %v729
        %835 = vst [vmem:[%s187 + $0x200] sm:$0xff] %v465
        %836 = vst [vmem:[%s187 + $0x208] sm:$0xff] %v554
        %837 = vst [vmem:[%s187 + $0x210] sm:$0xff] %v643
        %838 = vst [vmem:[%s187 + $0x218] sm:$0xff] %v732
        %839 = vst [vmem:[%s187 + $0x220] sm:$0xff] %v467
        %840 = vst [vmem:[%s187 + $0x228] sm:$0xff] %v556
        %841 = vst [vmem:[%s187 + $0x230] sm:$0xff] %v645
        %842 = vst [vmem:[%s187 + $0x238] sm:$0xff] %v734
        %843 = vst [vmem:[%s187 + $0x240] sm:$0xff] %v470
        %844 = vst [vmem:[%s187 + $0x248] sm:$0xff] %v559
        %845 = vst [vmem:[%s187 + $0x250] sm:$0xff] %v648
        %846 = vst [vmem:[%s187 + $0x258] sm:$0xff] %v737
        %847 = vst [vmem:[%s187 + $0x260] sm:$0xff] %v472
        %848 = vst [vmem:[%s187 + $0x268] sm:$0xff] %v561
        %849 = vst [vmem:[%s187 + $0x270] sm:$0xff] %v650
        %850 = vst [vmem:[%s187 + $0x278] sm:$0xff] %v739
        %851 = vst [vmem:[%s187 + $0x280] sm:$0xff] %v475
        %852 = vst [vmem:[%s187 + $0x288] sm:$0xff] %v564
        %853 = vst [vmem:[%s187 + $0x290] sm:$0xff] %v653
        %854 = vst [vmem:[%s187 + $0x298] sm:$0xff] %v742
        %855 = vst [vmem:[%s187 + $0x2a0] sm:$0xff] %v477
        %856 = vst [vmem:[%s187 + $0x2a8] sm:$0xff] %v566
        %857 = vst [vmem:[%s187 + $0x2b0] sm:$0xff] %v655
        %858 = vst [vmem:[%s187 + $0x2b8] sm:$0xff] %v744
        %859 = vst [vmem:[%s187 + $0x2c0] sm:$0xff] %v480
        %860 = vst [vmem:[%s187 + $0x2c8] sm:$0xff] %v569
        %861 = vst [vmem:[%s187 + $0x2d0] sm:$0xff] %v658
        %862 = vst [vmem:[%s187 + $0x2d8] sm:$0xff] %v747
        %863 = vst [vmem:[%s187 + $0x2e0] sm:$0xff] %v482
        %864 = vst [vmem:[%s187 + $0x2e8] sm:$0xff] %v571
        %865 = vst [vmem:[%s187 + $0x2f0] sm:$0xff] %v660
        %866 = vst [vmem:[%s187 + $0x2f8] sm:$0xff] %v749
        %867 = vst [vmem:[%s187 + $0x300] sm:$0xff] %v485
        %868 = vst [vmem:[%s187 + $0x308] sm:$0xff] %v574
        %869 = vst [vmem:[%s187 + $0x310] sm:$0xff] %v663
        %870 = vst [vmem:[%s187 + $0x318] sm:$0xff] %v752
        %871 = vst [vmem:[%s187 + $0x320] sm:$0xff] %v487
        %872 = vst [vmem:[%s187 + $0x328] sm:$0xff] %v576
        %873 = vst [vmem:[%s187 + $0x330] sm:$0xff] %v665
        %874 = vst [vmem:[%s187 + $0x338] sm:$0xff] %v754
        %875 = vst [vmem:[%s187 + $0x340] sm:$0xff] %v490
        %876 = vst [vmem:[%s187 + $0x348] sm:$0xff] %v579
        %877 = vst [vmem:[%s187 + $0x350] sm:$0xff] %v668
        %878 = vst [vmem:[%s187 + $0x358] sm:$0xff] %v757
        %879 = vst [vmem:[%s187 + $0x360] sm:$0xff] %v492
        %880 = vst [vmem:[%s187 + $0x368] sm:$0xff] %v581
        %881 = vst [vmem:[%s187 + $0x370] sm:$0xff] %v670
        %882 = vst [vmem:[%s187 + $0x378] sm:$0xff] %v759
        %883 = vst [vmem:[%s187 + $0x380] sm:$0xff] %v495
        %884 = vst [vmem:[%s187 + $0x388] sm:$0xff] %v584
        %885 = vst [vmem:[%s187 + $0x390] sm:$0xff] %v673
        %886 = vst [vmem:[%s187 + $0x398] sm:$0xff] %v762
        %887 = vst [vmem:[%s187 + $0x3a0] sm:$0xff] %v497
        %888 = vst [vmem:[%s187 + $0x3a8] sm:$0xff] %v586
        %889 = vst [vmem:[%s187 + $0x3b0] sm:$0xff] %v675
        %890 = vst [vmem:[%s187 + $0x3b8] sm:$0xff] %v764
        %891 = vst [vmem:[%s187 + $0x3c0] sm:$0xff] %v500
        %892 = vst [vmem:[%s187 + $0x3c8] sm:$0xff] %v589
        %893 = vst [vmem:[%s187 + $0x3d0] sm:$0xff] %v678
        %894 = vst [vmem:[%s187 + $0x3d8] sm:$0xff] %v767
        %895 = vst [vmem:[%s187 + $0x3e0] sm:$0xff] %v502
        %896 = vst [vmem:[%s187 + $0x3e8] sm:$0xff] %v591
        %897 = vst [vmem:[%s187 + $0x3f0] sm:$0xff] %v680
        %898 = vst [vmem:[%s187 + $0x3f8] sm:$0xff] %v769
        %s899 = sand.u32 %s112, 1
        %s900 = sand.u32 %s112, 1
        %s901 = smul.addr %s900, 1024
        %s902 = scalar_lea.vmem [#allocation2], %s901
        // Predicated region
        $region37: #{pre_conv_transpose3d.1} parent=35 // pred_check
          %p903 = pneg %p122
        $region38: #{pre_conv_transpose3d.1} parent=35 // pred_check_branch
          %905 = sbr.rel (%p903) target = $region40
        $region39: #{pre_conv_transpose3d.1} parent=35 // pred_region
          %s906 = smul.u32 4, %s15
          %s907 = smul.addr %s906, 8
          %s908 = scalar_lea.vmem %s4, %s907
          // Predicated region
          $region41: #{pre_conv_transpose3d.1} parent=39 // pred_check
            _
          $region42: #{pre_conv_transpose3d.1} parent=39 // pred_check_branch
            %910 = sbr.rel (0) target = $region44
          $region43: #{pre_conv_transpose3d.1} parent=39 // pred_region
            // Predicated region
            $region45: #{pre_conv_transpose3d.1} parent=43 // pred_check
              _
            $region46: #{pre_conv_transpose3d.1} parent=43 // pred_check_branch
              %912 = sbr.rel (0) target = $region48
            $region47: #{pre_conv_transpose3d.1} parent=43 // pred_region
              loop: start=0, step=1, limit=1
              $region49: #{pre_conv_transpose3d.1} parent=47 // loop_pre_header
                _
              $region50: #{pre_conv_transpose3d.1} parent=47 // loop_header
                %s914 = sphi 0, %s918
                %p915 = scmp.ge.s32.totalorder %s914, 1
                %s919 = sphi %s902, %s902
                %s920 = sphi %s908, %s908
              $region51: #{pre_conv_transpose3d.1} parent=47 // loop_header_branch
                %917 = sbr.rel (%p915) target = $region55
              $region52: #{pre_conv_transpose3d.1} parent=47 // loop_body
                %v921 = vld [vmem:[%s919] sm:$0xff]
                %922 = vst [vmem:[%s920] sm:$0xff] %v921
                %v923 = vld [vmem:[%s919 + $0x8] sm:$0xff]
                %924 = vst [vmem:[%s920 + $0x8] sm:$0xff] %v923
                %v925 = vld [vmem:[%s919 + $0x10] sm:$0xff]
                %926 = vst [vmem:[%s920 + $0x10] sm:$0xff] %v925
                %v927 = vld [vmem:[%s919 + $0x18] sm:$0xff]
                %928 = vst [vmem:[%s920 + $0x18] sm:$0xff] %v927
                %v929 = vld [vmem:[%s919 + $0x20] sm:$0xff]
                %930 = vst [vmem:[%s920 + $0x40] sm:$0xff] %v929
                %v931 = vld [vmem:[%s919 + $0x28] sm:$0xff]
                %932 = vst [vmem:[%s920 + $0x48] sm:$0xff] %v931
                %v933 = vld [vmem:[%s919 + $0x30] sm:$0xff]
                %934 = vst [vmem:[%s920 + $0x50] sm:$0xff] %v933
                %v935 = vld [vmem:[%s919 + $0x38] sm:$0xff]
                %936 = vst [vmem:[%s920 + $0x58] sm:$0xff] %v935
                %v937 = vld [vmem:[%s919 + $0x40] sm:$0xff]
                %938 = vst [vmem:[%s920 + $0x80] sm:$0xff] %v937
                %v939 = vld [vmem:[%s919 + $0x48] sm:$0xff]
                %940 = vst [vmem:[%s920 + $0x88] sm:$0xff] %v939
                %v941 = vld [vmem:[%s919 + $0x50] sm:$0xff]
                %942 = vst [vmem:[%s920 + $0x90] sm:$0xff] %v941
                %v943 = vld [vmem:[%s919 + $0x58] sm:$0xff]
                %944 = vst [vmem:[%s920 + $0x98] sm:$0xff] %v943
                %v945 = vld [vmem:[%s919 + $0x60] sm:$0xff]
                %946 = vst [vmem:[%s920 + $0xc0] sm:$0xff] %v945
                %v947 = vld [vmem:[%s919 + $0x68] sm:$0xff]
                %948 = vst [vmem:[%s920 + $0xc8] sm:$0xff] %v947
                %v949 = vld [vmem:[%s919 + $0x70] sm:$0xff]
                %950 = vst [vmem:[%s920 + $0xd0] sm:$0xff] %v949
                %v951 = vld [vmem:[%s919 + $0x78] sm:$0xff]
                %952 = vst [vmem:[%s920 + $0xd8] sm:$0xff] %v951
                %v953 = vld [vmem:[%s919 + $0x80] sm:$0xff]
                %954 = vst [vmem:[%s920 + $0x100] sm:$0xff] %v953
                %v955 = vld [vmem:[%s919 + $0x88] sm:$0xff]
                %956 = vst [vmem:[%s920 + $0x108] sm:$0xff] %v955
                %v957 = vld [vmem:[%s919 + $0x90] sm:$0xff]
                %958 = vst [vmem:[%s920 + $0x110] sm:$0xff] %v957
                %v959 = vld [vmem:[%s919 + $0x98] sm:$0xff]
                %960 = vst [vmem:[%s920 + $0x118] sm:$0xff] %v959
                %v961 = vld [vmem:[%s919 + $0xa0] sm:$0xff]
                %962 = vst [vmem:[%s920 + $0x140] sm:$0xff] %v961
                %v963 = vld [vmem:[%s919 + $0xa8] sm:$0xff]
                %964 = vst [vmem:[%s920 + $0x148] sm:$0xff] %v963
                %v965 = vld [vmem:[%s919 + $0xb0] sm:$0xff]
                %966 = vst [vmem:[%s920 + $0x150] sm:$0xff] %v965
                %v967 = vld [vmem:[%s919 + $0xb8] sm:$0xff]
                %968 = vst [vmem:[%s920 + $0x158] sm:$0xff] %v967
                %v969 = vld [vmem:[%s919 + $0xc0] sm:$0xff]
                %970 = vst [vmem:[%s920 + $0x180] sm:$0xff] %v969
                %v971 = vld [vmem:[%s919 + $0xc8] sm:$0xff]
                %972 = vst [vmem:[%s920 + $0x188] sm:$0xff] %v971
                %v973 = vld [vmem:[%s919 + $0xd0] sm:$0xff]
                %974 = vst [vmem:[%s920 + $0x190] sm:$0xff] %v973
                %v975 = vld [vmem:[%s919 + $0xd8] sm:$0xff]
                %976 = vst [vmem:[%s920 + $0x198] sm:$0xff] %v975
                %v977 = vld [vmem:[%s919 + $0xe0] sm:$0xff]
                %978 = vst [vmem:[%s920 + $0x1c0] sm:$0xff] %v977
                %v979 = vld [vmem:[%s919 + $0xe8] sm:$0xff]
                %980 = vst [vmem:[%s920 + $0x1c8] sm:$0xff] %v979
                %v981 = vld [vmem:[%s919 + $0xf0] sm:$0xff]
                %982 = vst [vmem:[%s920 + $0x1d0] sm:$0xff] %v981
                %v983 = vld [vmem:[%s919 + $0xf8] sm:$0xff]
                %984 = vst [vmem:[%s920 + $0x1d8] sm:$0xff] %v983
                %v985 = vld [vmem:[%s919 + $0x100] sm:$0xff]
                %986 = vst [vmem:[%s920 + $0x200] sm:$0xff] %v985
                %v987 = vld [vmem:[%s919 + $0x108] sm:$0xff]
                %988 = vst [vmem:[%s920 + $0x208] sm:$0xff] %v987
                %v989 = vld [vmem:[%s919 + $0x110] sm:$0xff]
                %990 = vst [vmem:[%s920 + $0x210] sm:$0xff] %v989
                %v991 = vld [vmem:[%s919 + $0x118] sm:$0xff]
                %992 = vst [vmem:[%s920 + $0x218] sm:$0xff] %v991
                %v993 = vld [vmem:[%s919 + $0x120] sm:$0xff]
                %994 = vst [vmem:[%s920 + $0x240] sm:$0xff] %v993
                %v995 = vld [vmem:[%s919 + $0x128] sm:$0xff]
                %996 = vst [vmem:[%s920 + $0x248] sm:$0xff] %v995
                %v997 = vld [vmem:[%s919 + $0x130] sm:$0xff]
                %998 = vst [vmem:[%s920 + $0x250] sm:$0xff] %v997
                %v999 = vld [vmem:[%s919 + $0x138] sm:$0xff]
                %1000 = vst [vmem:[%s920 + $0x258] sm:$0xff] %v999
                %v1001 = vld [vmem:[%s919 + $0x140] sm:$0xff]
                %1002 = vst [vmem:[%s920 + $0x280] sm:$0xff] %v1001
                %v1003 = vld [vmem:[%s919 + $0x148] sm:$0xff]
                %1004 = vst [vmem:[%s920 + $0x288] sm:$0xff] %v1003
                %v1005 = vld [vmem:[%s919 + $0x150] sm:$0xff]
                %1006 = vst [vmem:[%s920 + $0x290] sm:$0xff] %v1005
                %v1007 = vld [vmem:[%s919 + $0x158] sm:$0xff]
                %1008 = vst [vmem:[%s920 + $0x298] sm:$0xff] %v1007
                %v1009 = vld [vmem:[%s919 + $0x160] sm:$0xff]
                %1010 = vst [vmem:[%s920 + $0x2c0] sm:$0xff] %v1009
                %v1011 = vld [vmem:[%s919 + $0x168] sm:$0xff]
                %1012 = vst [vmem:[%s920 + $0x2c8] sm:$0xff] %v1011
                %v1013 = vld [vmem:[%s919 + $0x170] sm:$0xff]
                %1014 = vst [vmem:[%s920 + $0x2d0] sm:$0xff] %v1013
                %v1015 = vld [vmem:[%s919 + $0x178] sm:$0xff]
                %1016 = vst [vmem:[%s920 + $0x2d8] sm:$0xff] %v1015
                %v1017 = vld [vmem:[%s919 + $0x180] sm:$0xff]
                %1018 = vst [vmem:[%s920 + $0x300] sm:$0xff] %v1017
                %v1019 = vld [vmem:[%s919 + $0x188] sm:$0xff]
                %1020 = vst [vmem:[%s920 + $0x308] sm:$0xff] %v1019
                %v1021 = vld [vmem:[%s919 + $0x190] sm:$0xff]
                %1022 = vst [vmem:[%s920 + $0x310] sm:$0xff] %v1021
                %v1023 = vld [vmem:[%s919 + $0x198] sm:$0xff]
                %1024 = vst [vmem:[%s920 + $0x318] sm:$0xff] %v1023
                %v1025 = vld [vmem:[%s919 + $0x1a0] sm:$0xff]
                %1026 = vst [vmem:[%s920 + $0x340] sm:$0xff] %v1025
                %v1027 = vld [vmem:[%s919 + $0x1a8] sm:$0xff]
                %1028 = vst [vmem:[%s920 + $0x348] sm:$0xff] %v1027
                %v1029 = vld [vmem:[%s919 + $0x1b0] sm:$0xff]
                %1030 = vst [vmem:[%s920 + $0x350] sm:$0xff] %v1029
                %v1031 = vld [vmem:[%s919 + $0x1b8] sm:$0xff]
                %1032 = vst [vmem:[%s920 + $0x358] sm:$0xff] %v1031
                %v1033 = vld [vmem:[%s919 + $0x1c0] sm:$0xff]
                %1034 = vst [vmem:[%s920 + $0x380] sm:$0xff] %v1033
                %v1035 = vld [vmem:[%s919 + $0x1c8] sm:$0xff]
                %1036 = vst [vmem:[%s920 + $0x388] sm:$0xff] %v1035
                %v1037 = vld [vmem:[%s919 + $0x1d0] sm:$0xff]
                %1038 = vst [vmem:[%s920 + $0x390] sm:$0xff] %v1037
                %v1039 = vld [vmem:[%s919 + $0x1d8] sm:$0xff]
                %1040 = vst [vmem:[%s920 + $0x398] sm:$0xff] %v1039
                %v1041 = vld [vmem:[%s919 + $0x1e0] sm:$0xff]
                %1042 = vst [vmem:[%s920 + $0x3c0] sm:$0xff] %v1041
                %v1043 = vld [vmem:[%s919 + $0x1e8] sm:$0xff]
                %1044 = vst [vmem:[%s920 + $0x3c8] sm:$0xff] %v1043
                %v1045 = vld [vmem:[%s919 + $0x1f0] sm:$0xff]
                %1046 = vst [vmem:[%s920 + $0x3d0] sm:$0xff] %v1045
                %v1047 = vld [vmem:[%s919 + $0x1f8] sm:$0xff]
                %1048 = vst [vmem:[%s920 + $0x3d8] sm:$0xff] %v1047
                %v1049 = vld [vmem:[%s919 + $0x200] sm:$0xff]
                %1050 = vst [vmem:[%s920 + $0x400] sm:$0xff] %v1049
                %v1051 = vld [vmem:[%s919 + $0x208] sm:$0xff]
                %1052 = vst [vmem:[%s920 + $0x408] sm:$0xff] %v1051
                %v1053 = vld [vmem:[%s919 + $0x210] sm:$0xff]
                %1054 = vst [vmem:[%s920 + $0x410] sm:$0xff] %v1053
                %v1055 = vld [vmem:[%s919 + $0x218] sm:$0xff]
                %1056 = vst [vmem:[%s920 + $0x418] sm:$0xff] %v1055
                %v1057 = vld [vmem:[%s919 + $0x220] sm:$0xff]
                %1058 = vst [vmem:[%s920 + $0x440] sm:$0xff] %v1057
                %v1059 = vld [vmem:[%s919 + $0x228] sm:$0xff]
                %1060 = vst [vmem:[%s920 + $0x448] sm:$0xff] %v1059
                %v1061 = vld [vmem:[%s919 + $0x230] sm:$0xff]
                %1062 = vst [vmem:[%s920 + $0x450] sm:$0xff] %v1061
                %v1063 = vld [vmem:[%s919 + $0x238] sm:$0xff]
                %1064 = vst [vmem:[%s920 + $0x458] sm:$0xff] %v1063
                %v1065 = vld [vmem:[%s919 + $0x240] sm:$0xff]
                %1066 = vst [vmem:[%s920 + $0x480] sm:$0xff] %v1065
                %v1067 = vld [vmem:[%s919 + $0x248] sm:$0xff]
                %1068 = vst [vmem:[%s920 + $0x488] sm:$0xff] %v1067
                %v1069 = vld [vmem:[%s919 + $0x250] sm:$0xff]
                %1070 = vst [vmem:[%s920 + $0x490] sm:$0xff] %v1069
                %v1071 = vld [vmem:[%s919 + $0x258] sm:$0xff]
                %1072 = vst [vmem:[%s920 + $0x498] sm:$0xff] %v1071
                %v1073 = vld [vmem:[%s919 + $0x260] sm:$0xff]
                %1074 = vst [vmem:[%s920 + $0x4c0] sm:$0xff] %v1073
                %v1075 = vld [vmem:[%s919 + $0x268] sm:$0xff]
                %1076 = vst [vmem:[%s920 + $0x4c8] sm:$0xff] %v1075
                %v1077 = vld [vmem:[%s919 + $0x270] sm:$0xff]
                %1078 = vst [vmem:[%s920 + $0x4d0] sm:$0xff] %v1077
                %v1079 = vld [vmem:[%s919 + $0x278] sm:$0xff]
                %1080 = vst [vmem:[%s920 + $0x4d8] sm:$0xff] %v1079
                %v1081 = vld [vmem:[%s919 + $0x280] sm:$0xff]
                %1082 = vst [vmem:[%s920 + $0x500] sm:$0xff] %v1081
                %v1083 = vld [vmem:[%s919 + $0x288] sm:$0xff]
                %1084 = vst [vmem:[%s920 + $0x508] sm:$0xff] %v1083
                %v1085 = vld [vmem:[%s919 + $0x290] sm:$0xff]
                %1086 = vst [vmem:[%s920 + $0x510] sm:$0xff] %v1085
                %v1087 = vld [vmem:[%s919 + $0x298] sm:$0xff]
                %1088 = vst [vmem:[%s920 + $0x518] sm:$0xff] %v1087
                %v1089 = vld [vmem:[%s919 + $0x2a0] sm:$0xff]
                %1090 = vst [vmem:[%s920 + $0x540] sm:$0xff] %v1089
                %v1091 = vld [vmem:[%s919 + $0x2a8] sm:$0xff]
                %1092 = vst [vmem:[%s920 + $0x548] sm:$0xff] %v1091
                %v1093 = vld [vmem:[%s919 + $0x2b0] sm:$0xff]
                %1094 = vst [vmem:[%s920 + $0x550] sm:$0xff] %v1093
                %v1095 = vld [vmem:[%s919 + $0x2b8] sm:$0xff]
                %1096 = vst [vmem:[%s920 + $0x558] sm:$0xff] %v1095
                %v1097 = vld [vmem:[%s919 + $0x2c0] sm:$0xff]
                %1098 = vst [vmem:[%s920 + $0x580] sm:$0xff] %v1097
                %v1099 = vld [vmem:[%s919 + $0x2c8] sm:$0xff]
                %1100 = vst [vmem:[%s920 + $0x588] sm:$0xff] %v1099
                %v1101 = vld [vmem:[%s919 + $0x2d0] sm:$0xff]
                %1102 = vst [vmem:[%s920 + $0x590] sm:$0xff] %v1101
                %v1103 = vld [vmem:[%s919 + $0x2d8] sm:$0xff]
                %1104 = vst [vmem:[%s920 + $0x598] sm:$0xff] %v1103
                %v1105 = vld [vmem:[%s919 + $0x2e0] sm:$0xff]
                %1106 = vst [vmem:[%s920 + $0x5c0] sm:$0xff] %v1105
                %v1107 = vld [vmem:[%s919 + $0x2e8] sm:$0xff]
                %1108 = vst [vmem:[%s920 + $0x5c8] sm:$0xff] %v1107
                %v1109 = vld [vmem:[%s919 + $0x2f0] sm:$0xff]
                %1110 = vst [vmem:[%s920 + $0x5d0] sm:$0xff] %v1109
                %v1111 = vld [vmem:[%s919 + $0x2f8] sm:$0xff]
                %1112 = vst [vmem:[%s920 + $0x5d8] sm:$0xff] %v1111
                %v1113 = vld [vmem:[%s919 + $0x300] sm:$0xff]
                %1114 = vst [vmem:[%s920 + $0x600] sm:$0xff] %v1113
                %v1115 = vld [vmem:[%s919 + $0x308] sm:$0xff]
                %1116 = vst [vmem:[%s920 + $0x608] sm:$0xff] %v1115
                %v1117 = vld [vmem:[%s919 + $0x310] sm:$0xff]
                %1118 = vst [vmem:[%s920 + $0x610] sm:$0xff] %v1117
                %v1119 = vld [vmem:[%s919 + $0x318] sm:$0xff]
                %1120 = vst [vmem:[%s920 + $0x618] sm:$0xff] %v1119
                %v1121 = vld [vmem:[%s919 + $0x320] sm:$0xff]
                %1122 = vst [vmem:[%s920 + $0x640] sm:$0xff] %v1121
                %v1123 = vld [vmem:[%s919 + $0x328] sm:$0xff]
                %1124 = vst [vmem:[%s920 + $0x648] sm:$0xff] %v1123
                %v1125 = vld [vmem:[%s919 + $0x330] sm:$0xff]
                %1126 = vst [vmem:[%s920 + $0x650] sm:$0xff] %v1125
                %v1127 = vld [vmem:[%s919 + $0x338] sm:$0xff]
                %1128 = vst [vmem:[%s920 + $0x658] sm:$0xff] %v1127
                %v1129 = vld [vmem:[%s919 + $0x340] sm:$0xff]
                %1130 = vst [vmem:[%s920 + $0x680] sm:$0xff] %v1129
                %v1131 = vld [vmem:[%s919 + $0x348] sm:$0xff]
                %1132 = vst [vmem:[%s920 + $0x688] sm:$0xff] %v1131
                %v1133 = vld [vmem:[%s919 + $0x350] sm:$0xff]
                %1134 = vst [vmem:[%s920 + $0x690] sm:$0xff] %v1133
                %v1135 = vld [vmem:[%s919 + $0x358] sm:$0xff]
                %1136 = vst [vmem:[%s920 + $0x698] sm:$0xff] %v1135
                %v1137 = vld [vmem:[%s919 + $0x360] sm:$0xff]
                %1138 = vst [vmem:[%s920 + $0x6c0] sm:$0xff] %v1137
                %v1139 = vld [vmem:[%s919 + $0x368] sm:$0xff]
                %1140 = vst [vmem:[%s920 + $0x6c8] sm:$0xff] %v1139
                %v1141 = vld [vmem:[%s919 + $0x370] sm:$0xff]
                %1142 = vst [vmem:[%s920 + $0x6d0] sm:$0xff] %v1141
                %v1143 = vld [vmem:[%s919 + $0x378] sm:$0xff]
                %1144 = vst [vmem:[%s920 + $0x6d8] sm:$0xff] %v1143
                %v1145 = vld [vmem:[%s919 + $0x380] sm:$0xff]
                %1146 = vst [vmem:[%s920 + $0x700] sm:$0xff] %v1145
                %v1147 = vld [vmem:[%s919 + $0x388] sm:$0xff]
                %1148 = vst [vmem:[%s920 + $0x708] sm:$0xff] %v1147
                %v1149 = vld [vmem:[%s919 + $0x390] sm:$0xff]
                %1150 = vst [vmem:[%s920 + $0x710] sm:$0xff] %v1149
                %v1151 = vld [vmem:[%s919 + $0x398] sm:$0xff]
                %1152 = vst [vmem:[%s920 + $0x718] sm:$0xff] %v1151
                %v1153 = vld [vmem:[%s919 + $0x3a0] sm:$0xff]
                %1154 = vst [vmem:[%s920 + $0x740] sm:$0xff] %v1153
                %v1155 = vld [vmem:[%s919 + $0x3a8] sm:$0xff]
                %1156 = vst [vmem:[%s920 + $0x748] sm:$0xff] %v1155
                %v1157 = vld [vmem:[%s919 + $0x3b0] sm:$0xff]
                %1158 = vst [vmem:[%s920 + $0x750] sm:$0xff] %v1157
                %v1159 = vld [vmem:[%s919 + $0x3b8] sm:$0xff]
                %1160 = vst [vmem:[%s920 + $0x758] sm:$0xff] %v1159
                %v1161 = vld [vmem:[%s919 + $0x3c0] sm:$0xff]
                %1162 = vst [vmem:[%s920 + $0x780] sm:$0xff] %v1161
                %v1163 = vld [vmem:[%s919 + $0x3c8] sm:$0xff]
                %1164 = vst [vmem:[%s920 + $0x788] sm:$0xff] %v1163
                %v1165 = vld [vmem:[%s919 + $0x3d0] sm:$0xff]
                %1166 = vst [vmem:[%s920 + $0x790] sm:$0xff] %v1165
                %v1167 = vld [vmem:[%s919 + $0x3d8] sm:$0xff]
                %1168 = vst [vmem:[%s920 + $0x798] sm:$0xff] %v1167
                %v1169 = vld [vmem:[%s919 + $0x3e0] sm:$0xff]
                %1170 = vst [vmem:[%s920 + $0x7c0] sm:$0xff] %v1169
                %v1171 = vld [vmem:[%s919 + $0x3e8] sm:$0xff]
                %1172 = vst [vmem:[%s920 + $0x7c8] sm:$0xff] %v1171
                %v1173 = vld [vmem:[%s919 + $0x3f0] sm:$0xff]
                %1174 = vst [vmem:[%s920 + $0x7d0] sm:$0xff] %v1173
                %v1175 = vld [vmem:[%s919 + $0x3f8] sm:$0xff]
                %1176 = vst [vmem:[%s920 + $0x7d8] sm:$0xff] %v1175
              $region53: #{pre_conv_transpose3d.1} parent=47 // loop_footer
                %s918 = sadd.s32 1, %s914
              $region54: #{pre_conv_transpose3d.1} parent=47 // loop_footer_branch
                %913 = sbr.rel target = $region50
              $region55: #{pre_conv_transpose3d.1} parent=47 // loop_exit
                _
            $region48: #{pre_conv_transpose3d.1} parent=43 // pred_fallthru
              _
            // Predicated region
            $region56: #{pre_conv_transpose3d.1} parent=43 // pred_check
              _
            $region57: #{pre_conv_transpose3d.1} parent=43 // pred_check_branch
              %1178 = sbr.rel target = $region59
            $region58: #{pre_conv_transpose3d.1} parent=43 // pred_region
              _
            $region59: #{pre_conv_transpose3d.1} parent=43 // pred_fallthru
              _
          $region44: #{pre_conv_transpose3d.1} parent=39 // pred_fallthru
            _
          %1179 = vnop
        $region40: #{pre_conv_transpose3d.1} parent=35 // pred_fallthru
          _
      $region36: #{pre_conv_transpose3d.1} parent=5 // pred_fallthru
        _
      %p1180 = scmp.le.s32.totalorder 2, %s10
      // Predicated region
      $region60: #{pre_conv_transpose3d.1} parent=5 // pred_check
        %p1181 = pneg %p1180
      $region61: #{pre_conv_transpose3d.1} parent=5 // pred_check_branch
        %1183 = sbr.rel (%p1181) target = $region63
      $region62: #{pre_conv_transpose3d.1} parent=5 // pred_region
        %s1184 = ssub.s32 %s10, 2
        // Predicated region
        $region64: #{pre_conv_transpose3d.1} parent=62 // pred_check
          %p1185 = pneg %p128
        $region65: #{pre_conv_transpose3d.1} parent=62 // pred_check_branch
          %1187 = sbr.rel (%p1185) target = $region67
        $region66: #{pre_conv_transpose3d.1} parent=62 // pred_region
          %s1188 = sand.u32 %s113, 1
          %s1189 = sand.u32 %s113, 1
          %s1190 = smul.addr %s1189, 1024
          %s1191 = scalar_lea.vmem [#allocation2], %s1190
        $region67: #{pre_conv_transpose3d.1} parent=62 // pred_fallthru
          _
      $region63: #{pre_conv_transpose3d.1} parent=5 // pred_fallthru
        _
    $region6: #{pre_conv_transpose3d.1} parent=1 // loop_footer
      %s14 = sadd.s32 1, %s10
    $region7: #{pre_conv_transpose3d.1} parent=1 // loop_footer_branch
      %9 = sbr.rel target = $region3
    $region8: #{pre_conv_transpose3d.1} parent=1 // loop_exit
      _

</llo_original>
